<compile_context>
chip_gen: v7x
topology: tpu7x:2x2x1
jax: 0.10.0
libtpu: 0.0.40
codegen_flags: <defaults>
</compile_context>

<pallas_src>
import functools

import jax
import jax.numpy as jnp
from jax.experimental import pallas as pl
from jax.experimental.pallas import tpu as pltpu


def _round_up(n, m):
    return ((n + m - 1) // m) * m


def _nbytes(a):
    return a.size * jnp.dtype(a.dtype).itemsize


@functools.lru_cache(maxsize=None)
def _device_defaults():
    """(feature_align, tm_max, vmem_limit_bytes) tuned per TPU generation."""
    kind = ""
    try:
        kind = jax.devices()[0].device_kind.lower()
    except Exception:
        pass
    vmem_cap = 64 * 1024 * 1024            # conservative: v7x has 64 MiB / TC
    try:
        vmem_cap = int(getattr(pltpu.get_tpu_info(), "vmem_capacity_bytes",
                               vmem_cap))
    except Exception:
        pass
    # v6e / v7x have 256-wide MXUs -> 256-aligned feature dims recover MXU
    # columns for in-between widths; v5e and older (128x128 MXU) keep 128.
    align = 128 if any(v in kind for v in ("v2", "v3", "v4", "v5")) else 256
    if vmem_cap >= 96 * 1024 * 1024:       # v5e / v6e: 128 MiB physical VMEM
        tm_max, vmem_limit = 512, 100 * 1024 * 1024
    else:                                   # v7x: 64 MiB per TensorCore
        tm_max, vmem_limit = 256, 56 * 1024 * 1024
    return align, tm_max, vmem_limit


def _choose_tm(batch, tm_max):
    """Batch-tile rows: multiple of 8, small padding waste, and (when the
    batch allows it) >=4 grid steps so the double-buffered pipeline has depth
    and v7x can shard the parallel batch axis across both TensorCores."""
    b8 = _round_up(max(int(batch), 1), 8)
    n_tiles = max(min(4, b8 // 8), pl.cdiv(b8, tm_max))
    tm = _round_up(pl.cdiv(b8, n_tiles), 8)
    return max(8, min(tm, tm_max))


def _mlp_kernel(x_ref, w1_ref, b1_ref, w2_ref, b2_ref, o_ref, acc_ref):
    # x_ref  : [TM, D_in_p]   f32  (streamed per batch tile; cast to bf16 here)
    # w1_ref : [D_in_p, TH]   bf16
    # b1_ref : [1, TH]        f32
    # w2_ref : [TH, D_out_p]  bf16
    # b2_ref : [1, D_out_p]   f32
    # o_ref  : [TM, D_out_p]  out dtype
    # acc_ref: [TM, D_out_p]  f32 VMEM scratch (accumulates over the H axis)
    h_idx = pl.program_id(1)

    @pl.when(h_idx == 0)
    def _():
        acc_ref[...] = jnp.zeros_like(acc_ref)

    x = x_ref[...].astype(jnp.bfloat16)               # VPU cast, hides under MXU
    h = jnp.dot(x, w1_ref[...], preferred_element_type=jnp.float32)
    h = jnp.maximum(h + b1_ref[...], 0.0)             # bias + ReLU in f32
    acc_ref[...] += jnp.dot(h.astype(w2_ref.dtype), w2_ref[...],
                            preferred_element_type=jnp.float32)

    @pl.when(h_idx == pl.num_programs(1) - 1)
    def _():
        o_ref[...] = (acc_ref[...] + b2_ref[...]).astype(o_ref.dtype)


def prepare_params(w1, b1, w2, b2, *, th_max=2048):
    """Pad + bf16-cast the weights ONCE (outside the per-call path).

    Zero padding is semantics-preserving: padded W1 columns + zero bias give
    relu(0)=0 hidden features that hit zero-padded W2 rows; padded output
    columns are sliced off in `simple_mlp`.
    Returns (w1_p, b1_p, w2_p, b2_p, d_out, th).
    """
    align, _, _ = _device_defaults()
    d_in, h_dim = w1.shape
    d_out = w2.shape[1]

    d_in_p = _round_up(d_in, 128)
    h_p = _round_up(h_dim, align)
    # Hidden-dim tiling: weights stream over the H grid axis when H is large,
    # so they never need to be fully resident in VMEM.
    n_h = pl.cdiv(h_p, th_max)
    th = _round_up(pl.cdiv(h_p, n_h), align)
    h_p = th * n_h
    d_out_p = _round_up(d_out, align)

    w1_p = jnp.pad(w1.astype(jnp.bfloat16),
                   ((0, d_in_p - d_in), (0, h_p - h_dim)))
    b1_p = jnp.pad(b1.astype(jnp.float32), (0, h_p - h_dim)).reshape(1, h_p)
    w2_p = jnp.pad(w2.astype(jnp.bfloat16),
                   ((0, h_p - h_dim), (0, d_out_p - d_out)))
    b2_p = jnp.pad(b2.astype(jnp.float32),
                   (0, d_out_p - d_out)).reshape(1, d_out_p)
    return w1_p, b1_p, w2_p, b2_p, int(d_out), int(th)


@functools.partial(jax.jit, static_argnames=("d_out", "th", "out_dtype"))
def _simple_mlp_impl(x, w1_p, b1_p, w2_p, b2_p, *, d_out, th, out_dtype):
    _, tm_max, vmem_limit = _device_defaults()
    B, d_in = x.shape
    d_in_p, h_p = w1_p.shape
    d_out_p = w2_p.shape[1]
    assert h_p % th == 0 and w2_p.shape[0] == h_p and d_in <= d_in_p
    n_h = h_p // th

    tm = _choose_tm(B, tm_max)
    b_p = tm * pl.cdiv(B, tm)
    n_b = b_p // tm

    # Pad x only when needed; x stays f32 (bf16 cast happens inside the kernel).
    if (b_p, d_in_p) != (B, d_in):
        x = jnp.pad(x, ((0, b_p - B), (0, d_in_p - d_in)))

    resident = n_h == 1   # weights fully resident (constant block index)

    def spec(shape, index_map, single_buffer=False):
        if single_buffer:
            try:
                return pl.BlockSpec(shape, index_map,
                                    pipeline_mode=pl.Buffered(1))
            except TypeError:   # older jax without pipeline_mode kwarg
                pass
        return pl.BlockSpec(shape, index_map)

    weight_bytes = (_nbytes(w1_p) + _nbytes(b1_p)
                    + _nbytes(w2_p) + _nbytes(b2_p))
    cost = pl.CostEstimate(
        flops=2 * b_p * (d_in_p * h_p + h_p * d_out_p),
        transcendentals=0,
        bytes_accessed=int(b_p * d_in_p * 4
                           + weight_bytes * (1 if resident else n_b)
                           + b_p * d_out_p * jnp.dtype(out_dtype).itemsize),
    )

    out_p = pl.pallas_call(
        _mlp_kernel,
        out_shape=jax.ShapeDtypeStruct((b_p, d_out_p), out_dtype),
        grid_spec=pltpu.PrefetchScalarGridSpec(
            num_scalar_prefetch=0,
            grid=(n_b, n_h),                       # reduction (H) axis last
            in_specs=[
                # activations: new batch tile per i, unchanged across h
                spec((tm, d_in_p), lambda i, h: (i, 0)),
                # weights / biases: single-buffered when fully resident,
                # streamed (double-buffered) over the H axis otherwise
                spec((d_in_p, th), lambda i, h: (0, h), single_buffer=resident),
                spec((1, th), lambda i, h: (0, h), single_buffer=resident),
                spec((th, d_out_p), lambda i, h: (h, 0), single_buffer=resident),
                spec((1, d_out_p), lambda i, h: (0, 0), single_buffer=True),
            ],
            out_specs=spec((tm, d_out_p), lambda i, h: (i, 0)),
            scratch_shapes=[pltpu.VMEM((tm, d_out_p), jnp.float32)],
        ),
        compiler_params=pltpu.CompilerParams(
            dimension_semantics=("parallel", "arbitrary"),
            vmem_limit_bytes=vmem_limit,
        ),
        cost_estimate=cost,
    )(x, w1_p, b1_p, w2_p, b2_p)

    return out_p[:B, :d_out]


def simple_mlp(x, params, *, out_dtype=jnp.float32):
    """Fused MLP forward: relu(x @ W1 + b1) @ W2 + b2.

    `params` is the tuple returned by `prepare_params` (weights already
    padded + cast once, outside the per-call path).
    """
    w1_p, b1_p, w2_p, b2_p, d_out, th = params
    return _simple_mlp_impl(x, w1_p, b1_p, w2_p, b2_p,
                            d_out=d_out, th=th, out_dtype=out_dtype)


def init_params(key, input_dim, hidden_dim, output_dim):
    """Deterministic init mimicking nn.Linear default (U[-1/sqrt(fan_in), +])."""
    k1, k2, k3, k4 = jax.random.split(key, 4)
    bound1 = 1.0 / jnp.sqrt(input_dim)
    bound2 = 1.0 / jnp.sqrt(hidden_dim)
    # Stored already transposed to [in, out] layout.
    w1 = jax.random.uniform(k1, (input_dim, hidden_dim), jnp.float32,
                            minval=-bound1, maxval=bound1)
    b1 = jax.random.uniform(k2, (hidden_dim,), jnp.float32,
                            minval=-bound1, maxval=bound1)
    w2 = jax.random.uniform(k3, (hidden_dim, output_dim), jnp.float32,
                            minval=-bound2, maxval=bound2)
    b2 = jax.random.uniform(k4, (output_dim,), jnp.float32,
                            minval=-bound2, maxval=bound2)
    return w1, b1, w2, b2


if __name__ == "__main__":
    key = jax.random.PRNGKey(0)
    k_x, k_p = jax.random.split(key)

    batch, input_dim, hidden_dim, output_dim = 8, 32, 64, 16
    x = jax.random.normal(k_x, (batch, input_dim), jnp.float32)
    w1, b1, w2, b2 = init_params(k_p, input_dim, hidden_dim, output_dim)

    params = prepare_params(w1, b1, w2, b2)        # pad + bf16-cast ONCE
    out = simple_mlp(x, params)
    out = jax.block_until_ready(out)

    # Reference check in plain JAX (same semantics as the PyTorch module).
    # Tolerance loosened vs. a pure-f32 kernel because matmul inputs are bf16
    # (f32 accumulation is kept via preferred_element_type).
    ref = jnp.maximum(x @ w1 + b1, 0.0) @ w2 + b2
    assert out.shape == (batch, output_dim)
    assert jnp.allclose(out, ref, atol=3e-2, rtol=3e-2), (
        float(jnp.max(jnp.abs(out - ref))))

    print("KERNEL_OK")
</pallas_src>

<mosaic_0001>
module attributes {stable_mosaic.version = 11 : i64} {
  func.func @_mlp_kernel(%arg0: i32, %arg1: i32, %arg2: memref<8x128xf32, #tpu.memory_space<vmem>>, %arg3: memref<128x256xbf16, #tpu.memory_space<vmem>>, %arg4: memref<1x256xf32, #tpu.memory_space<vmem>>, %arg5: memref<256x256xbf16, #tpu.memory_space<vmem>>, %arg6: memref<1x256xf32, #tpu.memory_space<vmem>>, %arg7: memref<8x256xf32, #tpu.memory_space<vmem>>, %arg8: memref<8x256xf32, #tpu.memory_space<vmem>>) attributes {dimension_semantics = [#tpu.dimension_semantics<parallel>, #tpu.dimension_semantics<arbitrary>], iteration_bounds = array<i64: 1, 1>, scalar_prefetch = 0 : i64, scratch_operands = 1 : i64, tpu.core_type = #tpu.core_type<tc>, window_params = [{transform_indices = @transform_0, window_bounds = array<i64: 8, 128>}, {pipeline_mode = #tpu.pipeline_mode<synchronous>, transform_indices = @transform_1, window_bounds = array<i64: 128, 256>}, {pipeline_mode = #tpu.pipeline_mode<synchronous>, transform_indices = @transform_2, window_bounds = array<i64: 1, 256>}, {pipeline_mode = #tpu.pipeline_mode<synchronous>, transform_indices = @transform_3, window_bounds = array<i64: 256, 256>}, {pipeline_mode = #tpu.pipeline_mode<synchronous>, transform_indices = @transform_4, window_bounds = array<i64: 1, 256>}, {transform_indices = @transform_5, window_bounds = array<i64: 8, 256>}]} {
    %c0_i32 = arith.constant 0 : i32
    %0 = arith.cmpi eq, %arg1, %c0_i32 : i32
    %1 = arith.extui %0 : i1 to i32
    %c0_i32_0 = arith.constant 0 : i32
    %2 = arith.cmpi ne, %1, %c0_i32_0 : i32
    scf.if %2 {
      %cst_16 = arith.constant 0.000000e+00 : f32
      %21 = vector.broadcast %cst_16 : f32 to vector<8x256xf32>
      %c0_17 = arith.constant 0 : index
      %c0_18 = arith.constant 0 : index
      %22 = vector.load %arg8[%c0_17, %c0_18] : memref<8x256xf32, #tpu.memory_space<vmem>>, vector<8x256xf32>
      tpu.vector_store %arg8[%c0_17, %c0_18], %21 {strides = array<i32>} : memref<8x256xf32, #tpu.memory_space<vmem>>, vector<8x256xf32>,
    } else {
    }
    %c0 = arith.constant 0 : index
    %c0_1 = arith.constant 0 : index
    %3 = vector.load %arg2[%c0, %c0_1] : memref<8x128xf32, #tpu.memory_space<vmem>>, vector<8x128xf32>
    %4 = arith.truncf %3 : vector<8x128xf32> to vector<8x128xbf16>
    %c0_2 = arith.constant 0 : index
    %c0_3 = arith.constant 0 : index
    %5 = vector.load %arg3[%c0_2, %c0_3] : memref<128x256xbf16, #tpu.memory_space<vmem>>, vector<128x256xbf16>
    %cst = arith.constant dense<0.000000e+00> : vector<8x256xf32>
    %6 = tpu.matmul %4, %5, %cst {dimension_numbers = #tpu.dot_dimension_numbers<[1], [0], [0], [1], [0, 0, 1, 1], [], []>} : vector<8x128xbf16>, vector<128x256xbf16>, vector<8x256xf32> -> vector<8x256xf32>
    %c0_4 = arith.constant 0 : index
    %c0_5 = arith.constant 0 : index
    %7 = vector.load %arg4[%c0_4, %c0_5] : memref<1x256xf32, #tpu.memory_space<vmem>>, vector<1x256xf32>
    %8 = vector.broadcast %7 : vector<1x256xf32> to vector<8x256xf32>
    %9 = arith.addf %6, %8 : vector<8x256xf32>
    %cst_6 = arith.constant 0.000000e+00 : f32
    %10 = vector.broadcast %cst_6 : f32 to vector<8x256xf32>
    %11 = arith.maximumf %9, %10 : vector<8x256xf32>
    %c0_7 = arith.constant 0 : index
    %c0_8 = arith.constant 0 : index
    %12 = vector.load %arg8[%c0_7, %c0_8] : memref<8x256xf32, #tpu.memory_space<vmem>>, vector<8x256xf32>
    %13 = arith.truncf %11 : vector<8x256xf32> to vector<8x256xbf16>
    %c0_9 = arith.constant 0 : index
    %c0_10 = arith.constant 0 : index
    %14 = vector.load %arg5[%c0_9, %c0_10] : memref<256x256xbf16, #tpu.memory_space<vmem>>, vector<256x256xbf16>
    %cst_11 = arith.constant dense<0.000000e+00> : vector<8x256xf32>
    %15 = tpu.matmul %13, %14, %cst_11 {dimension_numbers = #tpu.dot_dimension_numbers<[1], [0], [0], [1], [0, 0, 1, 1], [], []>} : vector<8x256xbf16>, vector<256x256xbf16>, vector<8x256xf32> -> vector<8x256xf32>
    %16 = arith.addf %12, %15 : vector<8x256xf32>
    %c0_12 = arith.constant 0 : index
    %c0_13 = arith.constant 0 : index
    %17 = vector.load %arg8[%c0_12, %c0_13] : memref<8x256xf32, #tpu.memory_space<vmem>>, vector<8x256xf32>
    tpu.vector_store %arg8[%c0_12, %c0_13], %16 {strides = array<i32>} : memref<8x256xf32, #tpu.memory_space<vmem>>, vector<8x256xf32>,
    %c0_i32_14 = arith.constant 0 : i32
    %18 = arith.cmpi eq, %arg1, %c0_i32_14 : i32
    %19 = arith.extui %18 : i1 to i32
    %c0_i32_15 = arith.constant 0 : i32
    %20 = arith.cmpi ne, %19, %c0_i32_15 : i32
    scf.if %20 {
      %c0_16 = arith.constant 0 : index
      %c0_17 = arith.constant 0 : index
      %21 = vector.load %arg8[%c0_16, %c0_17] : memref<8x256xf32, #tpu.memory_space<vmem>>, vector<8x256xf32>
      %c0_18 = arith.constant 0 : index
      %c0_19 = arith.constant 0 : index
      %22 = vector.load %arg6[%c0_18, %c0_19] : memref<1x256xf32, #tpu.memory_space<vmem>>, vector<1x256xf32>
      %23 = vector.broadcast %22 : vector<1x256xf32> to vector<8x256xf32>
      %24 = arith.addf %21, %23 : vector<8x256xf32>
      %c0_20 = arith.constant 0 : index
      %c0_21 = arith.constant 0 : index
      %25 = vector.load %arg7[%c0_20, %c0_21] : memref<8x256xf32, #tpu.memory_space<vmem>>, vector<8x256xf32>
      tpu.vector_store %arg7[%c0_20, %c0_21], %24 {strides = array<i32>} : memref<8x256xf32, #tpu.memory_space<vmem>>, vector<8x256xf32>,
    } else {
    }
    return
  }
  func.func @transform_0(%arg0: i32, %arg1: i32) -> (i32, i32) {
    %c0_i32 = arith.constant 0 : i32
    %c0_i32_0 = arith.constant 0 : i32
    return %arg0, %c0_i32 : i32, i32
  }
  func.func @transform_1(%arg0: i32, %arg1: i32) -> (i32, i32) {
    %c0_i32 = arith.constant 0 : i32
    %c0_i32_0 = arith.constant 0 : i32
    return %c0_i32, %arg1 : i32, i32
  }
  func.func @transform_2(%arg0: i32, %arg1: i32) -> (i32, i32) {
    %c0_i32 = arith.constant 0 : i32
    %c0_i32_0 = arith.constant 0 : i32
    return %c0_i32, %arg1 : i32, i32
  }
  func.func @transform_3(%arg0: i32, %arg1: i32) -> (i32, i32) {
    %c0_i32 = arith.constant 0 : i32
    %c0_i32_0 = arith.constant 0 : i32
    return %arg1, %c0_i32 : i32, i32
  }
  func.func @transform_4(%arg0: i32, %arg1: i32) -> (i32, i32) {
    %c0_i32 = arith.constant 0 : i32
    %c0_i32_0 = arith.constant 0 : i32
    %c0_i32_1 = arith.constant 0 : i32
    return %c0_i32, %c0_i32_0 : i32, i32
  }
  func.func @transform_5(%arg0: i32, %arg1: i32) -> (i32, i32) {
    %c0_i32 = arith.constant 0 : i32
    %c0_i32_0 = arith.constant 0 : i32
    return %arg0, %c0_i32 : i32, i32
  }
}

</mosaic_0001>

<llo_original>
// kernel: _simple_mlp_impl.1
$region0: #{_simple_mlp_impl.1}
  #allocation0 [shape = 'u32[]', space=smem, size = 0x4, offset = 0x4, fixed_abs, tag = 'smem constant byte address 0x4 - core index']
  #allocation1 [shape = 'u32[144,128]{1,0:T(1,128)}', space=vmem, size = 0x12000, scoped, tag = 'internal scratch']
  #allocation2 [shape = 'f32[8,256]{1,0:T(8,128)}', space=vmem, size = 0x2000, scoped, tag = 'scratch operand']
  %s0 = inlined_call_operand.vmem [shape: f32[8,128], index: 0, kind: input, shape index: {}]
  %s1 = inlined_call_operand.hbm [shape: bf16[128,256], index: 1, kind: input, shape index: {}]
  %s2 = inlined_call_operand.vmem [shape: f32[1,256], index: 2, kind: input, shape index: {}]
  %s3 = inlined_call_operand.hbm [shape: bf16[256,256], index: 3, kind: input, shape index: {}]
  %s4 = inlined_call_operand.vmem [shape: f32[1,256], index: 4, kind: input, shape index: {}]
  %s5 = inlined_call_operand.vmem [shape: f32[8,256], index: 5, kind: output, shape index: {}]
  %s6 = sld [smem:[#allocation0]]
  $region46: #{_simple_mlp_impl.1} parent=0
    _
  %s8 = ssub.s32 1, %s6
  %s9 = scalar_select 0, %s8, %s6
  $region1: #{_simple_mlp_impl.1} parent=0
    #allocation3 [shape = 'u8[65536]{0}', space=vmem, size = 0x10000, scoped, tag = 'input window, operand 1, single buffered']
    #allocation4 [shape = 's32[1]{0}', space=sflag, size = 0x4, scoped, tag = 'scoped memory for _simple_mlp_impl.1']
    #allocation5 [shape = 'u8[131072]{0}', space=vmem, size = 0x20000, scoped, tag = 'input window, operand 3, single buffered']
    #allocation6 [shape = 's32[1]{0}', space=sflag, size = 0x4, scoped, tag = 'scoped memory for _simple_mlp_impl.1']
    %10 = vsyncpa [#allocation4], 0
    %11 = vsyncpa [#allocation6], 0
    // Predicated region
    $region2: #{_simple_mlp_impl.1} parent=1 // pred_check
      _
    $region3: #{_simple_mlp_impl.1} parent=1 // pred_check_branch
      %13 = sbr.rel (0) target = $region5
    $region4: #{_simple_mlp_impl.1} parent=1 // pred_region
      _
    $region5: #{_simple_mlp_impl.1} parent=1 // pred_fallthru
      _
    // Predicated region
    $region6: #{_simple_mlp_impl.1} parent=1 // pred_check
      _
    $region7: #{_simple_mlp_impl.1} parent=1 // pred_check_branch
      %15 = sbr.rel (0) target = $region9
    $region8: #{_simple_mlp_impl.1} parent=1 // pred_region
      %s17 = ssub.s32 2048, 2048
      %18 = vsyncadd [#allocation4], %s17
      %s19 = sshll.u32 [#allocation3], 4
      %s20 = int_to_ptr.vmem [resolvable:$true] %s19
      %25 = dma.hbm_to_vmem [thread:$0]  %s1, 2048, %s20, [#allocation4], 128, 128, 8
    $region9: #{_simple_mlp_impl.1} parent=1 // pred_fallthru
      _
    // Predicated region
    $region10: #{_simple_mlp_impl.1} parent=1 // pred_check
      _
    $region11: #{_simple_mlp_impl.1} parent=1 // pred_check_branch
      %27 = sbr.rel (0) target = $region13
    $region12: #{_simple_mlp_impl.1} parent=1 // pred_region
      _
    $region13: #{_simple_mlp_impl.1} parent=1 // pred_fallthru
      _
    // Predicated region
    $region14: #{_simple_mlp_impl.1} parent=1 // pred_check
      _
    $region15: #{_simple_mlp_impl.1} parent=1 // pred_check_branch
      %29 = sbr.rel (0) target = $region17
    $region16: #{_simple_mlp_impl.1} parent=1 // pred_region
      %s31 = ssub.s32 4096, 4096
      %32 = vsyncadd [#allocation6], %s31
      %s33 = sshll.u32 [#allocation5], 4
      %s34 = int_to_ptr.vmem [resolvable:$true] %s33
      %39 = dma.hbm_to_vmem [thread:$0]  %s3, 4096, %s34, [#allocation6], 128, 128, 8
    $region17: #{_simple_mlp_impl.1} parent=1 // pred_fallthru
      _
    // Predicated region
    $region18: #{_simple_mlp_impl.1} parent=1 // pred_check
      _
    $region19: #{_simple_mlp_impl.1} parent=1 // pred_check_branch
      %41 = sbr.rel (0) target = $region21
    $region20: #{_simple_mlp_impl.1} parent=1 // pred_region
      _
    $region21: #{_simple_mlp_impl.1} parent=1 // pred_fallthru
      _
    // Predicated region
    $region22: #{_simple_mlp_impl.1} parent=1 // pred_check
      _
    $region23: #{_simple_mlp_impl.1} parent=1 // pred_check_branch
      %43 = sbr.rel (0) target = $region25
    $region24: #{_simple_mlp_impl.1} parent=1 // pred_region
      %44 = dma.done [#allocation4], 2048
    $region25: #{_simple_mlp_impl.1} parent=1 // pred_fallthru
      _
    // Predicated region
    $region26: #{_simple_mlp_impl.1} parent=1 // pred_check
      _
    $region27: #{_simple_mlp_impl.1} parent=1 // pred_check_branch
      %46 = sbr.rel (0) target = $region29
    $region28: #{_simple_mlp_impl.1} parent=1 // pred_region
      %47 = dma.done [#allocation6], 4096
    $region29: #{_simple_mlp_impl.1} parent=1 // pred_fallthru
      _
    %p49 = scmp.eq.s32.totalorder 0, 0
    // Predicated region
    $region30: #{_simple_mlp_impl.1} parent=1 // pred_check
      %p50 = pneg %p49
    $region31: #{_simple_mlp_impl.1} parent=1 // pred_check_branch
      %52 = sbr.rel (%p50) target = $region33
    $region32: #{_simple_mlp_impl.1} parent=1 // pred_region
      %53 = vst [vmem:[#allocation2] sm:$0xff] 0.0
      %54 = vst [vmem:[#allocation2 + $0x8] sm:$0xff] 0.0
    $region33: #{_simple_mlp_impl.1} parent=1 // pred_fallthru
      _
    %v55 = vld [vmem:[%s0] sm:$0xff]
    %v56 = vpack.c.bf16 %v55, %v55
    %v57 = vld [vmem:[#allocation3] sm:$0xff]
    %v58 = vld [vmem:[#allocation3 + $0x8] sm:$0xff]
    %v59 = vld [vmem:[#allocation3 + $0x10] sm:$0xff]
    %v60 = vld [vmem:[#allocation3 + $0x18] sm:$0xff]
    %v61 = vld [vmem:[#allocation3 + $0x20] sm:$0xff]
    %v62 = vld [vmem:[#allocation3 + $0x28] sm:$0xff]
    %v63 = vld [vmem:[#allocation3 + $0x30] sm:$0xff]
    %v64 = vld [vmem:[#allocation3 + $0x38] sm:$0xff]
    %v65 = vld [vmem:[#allocation3 + $0x40] sm:$0xff]
    %v66 = vld [vmem:[#allocation3 + $0x48] sm:$0xff]
    %v67 = vld [vmem:[#allocation3 + $0x50] sm:$0xff]
    %v68 = vld [vmem:[#allocation3 + $0x58] sm:$0xff]
    %v69 = vld [vmem:[#allocation3 + $0x60] sm:$0xff]
    %v70 = vld [vmem:[#allocation3 + $0x68] sm:$0xff]
    %v71 = vld [vmem:[#allocation3 + $0x70] sm:$0xff]
    %v72 = vld [vmem:[#allocation3 + $0x78] sm:$0xff]
    %v73 = vld [vmem:[%s2] sm:$0x3]
    %v75 = vlaneseq
    %v76 = vshrl.u32 %v75, 7
    %v77 = vsub.s32 0, %v76
    %v78 = vrot.slane %v73, %v77
    %v79 = vlaneseq
    %v80 = vshrl.u32 %v79, 7
    %v81 = vsub.s32 1, %v80
    %v82 = vrot.slane %v73, %v81
    %v101 = vunpack.c.l.b16 %v57
    %v102 = vunpack.c.h.b16 %v57
    %v103 = vunpack.c.l.b16 %v58
    %v104 = vunpack.c.h.b16 %v58
    %v105 = vunpack.c.l.b16 %v59
    %v106 = vunpack.c.h.b16 %v59
    %v107 = vunpack.c.l.b16 %v60
    %v108 = vunpack.c.h.b16 %v60
    %v109 = vunpack.c.l.b16 %v61
    %v110 = vunpack.c.h.b16 %v61
    %v111 = vunpack.c.l.b16 %v62
    %v112 = vunpack.c.h.b16 %v62
    %v113 = vunpack.c.l.b16 %v63
    %v114 = vunpack.c.h.b16 %v63
    %v115 = vunpack.c.l.b16 %v64
    %v116 = vunpack.c.h.b16 %v64
    %v117 = vunpack.c.l.b16 %v65
    %v118 = vunpack.c.h.b16 %v65
    %v119 = vunpack.c.l.b16 %v66
    %v120 = vunpack.c.h.b16 %v66
    %v121 = vunpack.c.l.b16 %v67
    %v122 = vunpack.c.h.b16 %v67
    %v123 = vunpack.c.l.b16 %v68
    %v124 = vunpack.c.h.b16 %v68
    %v125 = vunpack.c.l.b16 %v69
    %v126 = vunpack.c.h.b16 %v69
    %v127 = vunpack.c.l.b16 %v70
    %v128 = vunpack.c.h.b16 %v70
    %v129 = vunpack.c.l.b16 %v71
    %v130 = vunpack.c.h.b16 %v71
    %v131 = vunpack.c.l.b16 %v72
    %v132 = vunpack.c.h.b16 %v72
    %v133 = vpack.c.b16 %v103, %v101
    %v134 = vpack.c.b16 %v104, %v102
    %v135 = vpack.c.b16 %v107, %v105
    %v136 = vpack.c.b16 %v108, %v106
    %v137 = vpack.c.b16 %v111, %v109
    %v138 = vpack.c.b16 %v112, %v110
    %v139 = vpack.c.b16 %v115, %v113
    %v140 = vpack.c.b16 %v116, %v114
    %v141 = vpack.c.b16 %v119, %v117
    %v142 = vpack.c.b16 %v120, %v118
    %v143 = vpack.c.b16 %v123, %v121
    %v144 = vpack.c.b16 %v124, %v122
    %v145 = vpack.c.b16 %v127, %v125
    %v146 = vpack.c.b16 %v128, %v126
    %v147 = vpack.c.b16 %v131, %v129
    %v148 = vpack.c.b16 %v132, %v130
    %165 = vmatprep.subr.bf16.mxu0 %v134
    %166 = vmatpush1.bf16.msra.mxu0 %v133
    %167 = vmatprep.subr.bf16.mxu0 %v136
    %168 = vmatpush1.bf16.msra.mxu0 %v135
    %169 = vmatprep.subr.bf16.mxu0 %v138
    %170 = vmatpush1.bf16.msra.mxu0 %v137
    %171 = vmatprep.subr.bf16.mxu0 %v140
    %172 = vmatpush1.bf16.msra.mxu0 %v139
    %173 = vmatprep.subr.bf16.mxu0 %v142
    %174 = vmatpush1.bf16.msra.mxu0 %v141
    %175 = vmatprep.subr.bf16.mxu0 %v144
    %176 = vmatpush1.bf16.msra.mxu0 %v143
    %177 = vmatprep.subr.bf16.mxu0 %v146
    %178 = vmatpush1.bf16.msra.mxu0 %v145
    %179 = vmatprep.subr.bf16.mxu0 %v148
    %180 = vmatpush1.bf16.msra.mxu0 %v147
    %181 = vmatprep.subr.bf16.mxu0 0
    %182 = vmatpush1.bf16.msra.mxu0 0
    %183 = vmatprep.subr.bf16.mxu0 0
    %184 = vmatpush1.bf16.msra.mxu0 0
    %185 = vmatprep.subr.bf16.mxu0 0
    %186 = vmatpush1.bf16.msra.mxu0 0
    %187 = vmatprep.subr.bf16.mxu0 0
    %188 = vmatpush1.bf16.msra.mxu0 0
    %189 = vmatprep.subr.bf16.mxu0 0
    %190 = vmatpush1.bf16.msra.mxu0 0
    %191 = vmatprep.subr.bf16.mxu0 0
    %192 = vmatpush1.bf16.msra.mxu0 0
    %193 = vmatprep.subr.bf16.mxu0 0
    %194 = vmatpush1.bf16.msra.mxu0 0
    %195 = vmatprep.subr.bf16.mxu0 0
    %196 = vmatpush1.bf16.msra.mxu0 0
    %197 = vmatprep.mubr.bf16.mxu0 0
    %198 = vmatmul.mubr.bf16.gmra.mrb[0].mxu0 %v56
    %v199 = vpop.f32.mrb[0].mxu0
    %v200 = vadd.f32 %v78, %v199
    %v201 = vpop.f32.mrb[0].mxu0
    %v202 = vadd.f32 %v82, %v201
    %v203 = vpop.f32.mrb[0].mxu0
    %v204 = vpop.f32.mrb[0].mxu0
    %205 = vdwg.mxu0
    %v206 = vmax.f32 %v200, 0.0
    %v207 = vmax.f32 %v202, 0.0
    %v208 = vld [vmem:[#allocation2] sm:$0xff]
    %v209 = vld [vmem:[#allocation2 + $0x8] sm:$0xff]
    %v210 = vpack.c.bf16 %v206, %v206
    %v211 = vpack.c.bf16 %v207, %v207
    %v212 = vld [vmem:[#allocation5] sm:$0xff]
    %v213 = vld [vmem:[#allocation5 + $0x8] sm:$0xff]
    %v214 = vld [vmem:[#allocation5 + $0x10] sm:$0xff]
    %v215 = vld [vmem:[#allocation5 + $0x18] sm:$0xff]
    %v216 = vld [vmem:[#allocation5 + $0x20] sm:$0xff]
    %v217 = vld [vmem:[#allocation5 + $0x28] sm:$0xff]
    %v218 = vld [vmem:[#allocation5 + $0x30] sm:$0xff]
    %v219 = vld [vmem:[#allocation5 + $0x38] sm:$0xff]
    %v220 = vld [vmem:[#allocation5 + $0x40] sm:$0xff]
    %v221 = vld [vmem:[#allocation5 + $0x48] sm:$0xff]
    %v222 = vld [vmem:[#allocation5 + $0x50] sm:$0xff]
    %v223 = vld [vmem:[#allocation5 + $0x58] sm:$0xff]
    %v224 = vld [vmem:[#allocation5 + $0x60] sm:$0xff]
    %v225 = vld [vmem:[#allocation5 + $0x68] sm:$0xff]
    %v226 = vld [vmem:[#allocation5 + $0x70] sm:$0xff]
    %v227 = vld [vmem:[#allocation5 + $0x78] sm:$0xff]
    %v228 = vld [vmem:[#allocation5 + $0x80] sm:$0xff]
    %v229 = vld [vmem:[#allocation5 + $0x88] sm:$0xff]
    %v230 = vld [vmem:[#allocation5 + $0x90] sm:$0xff]
    %v231 = vld [vmem:[#allocation5 + $0x98] sm:$0xff]
    %v232 = vld [vmem:[#allocation5 + $0xa0] sm:$0xff]
    %v233 = vld [vmem:[#allocation5 + $0xa8] sm:$0xff]
    %v234 = vld [vmem:[#allocation5 + $0xb0] sm:$0xff]
    %v235 = vld [vmem:[#allocation5 + $0xb8] sm:$0xff]
    %v236 = vld [vmem:[#allocation5 + $0xc0] sm:$0xff]
    %v237 = vld [vmem:[#allocation5 + $0xc8] sm:$0xff]
    %v238 = vld [vmem:[#allocation5 + $0xd0] sm:$0xff]
    %v239 = vld [vmem:[#allocation5 + $0xd8] sm:$0xff]
    %v240 = vld [vmem:[#allocation5 + $0xe0] sm:$0xff]
    %v241 = vld [vmem:[#allocation5 + $0xe8] sm:$0xff]
    %v242 = vld [vmem:[#allocation5 + $0xf0] sm:$0xff]
    %v243 = vld [vmem:[#allocation5 + $0xf8] sm:$0xff]
    %v276 = vunpack.c.l.b16 %v212
    %v277 = vunpack.c.h.b16 %v212
    %v278 = vunpack.c.l.b16 %v213
    %v279 = vunpack.c.h.b16 %v213
    %v280 = vunpack.c.l.b16 %v214
    %v281 = vunpack.c.h.b16 %v214
    %v282 = vunpack.c.l.b16 %v215
    %v283 = vunpack.c.h.b16 %v215
    %v284 = vunpack.c.l.b16 %v216
    %v285 = vunpack.c.h.b16 %v216
    %v286 = vunpack.c.l.b16 %v217
    %v287 = vunpack.c.h.b16 %v217
    %v288 = vunpack.c.l.b16 %v218
    %v289 = vunpack.c.h.b16 %v218
    %v290 = vunpack.c.l.b16 %v219
    %v291 = vunpack.c.h.b16 %v219
    %v292 = vunpack.c.l.b16 %v220
    %v293 = vunpack.c.h.b16 %v220
    %v294 = vunpack.c.l.b16 %v221
    %v295 = vunpack.c.h.b16 %v221
    %v296 = vunpack.c.l.b16 %v222
    %v297 = vunpack.c.h.b16 %v222
    %v298 = vunpack.c.l.b16 %v223
    %v299 = vunpack.c.h.b16 %v223
    %v300 = vunpack.c.l.b16 %v224
    %v301 = vunpack.c.h.b16 %v224
    %v302 = vunpack.c.l.b16 %v225
    %v303 = vunpack.c.h.b16 %v225
    %v304 = vunpack.c.l.b16 %v226
    %v305 = vunpack.c.h.b16 %v226
    %v306 = vunpack.c.l.b16 %v227
    %v307 = vunpack.c.h.b16 %v227
    %v308 = vunpack.c.l.b16 %v228
    %v309 = vunpack.c.h.b16 %v228
    %v310 = vunpack.c.l.b16 %v229
    %v311 = vunpack.c.h.b16 %v229
    %v312 = vunpack.c.l.b16 %v230
    %v313 = vunpack.c.h.b16 %v230
    %v314 = vunpack.c.l.b16 %v231
    %v315 = vunpack.c.h.b16 %v231
    %v316 = vunpack.c.l.b16 %v232
    %v317 = vunpack.c.h.b16 %v232
    %v318 = vunpack.c.l.b16 %v233
    %v319 = vunpack.c.h.b16 %v233
    %v320 = vunpack.c.l.b16 %v234
    %v321 = vunpack.c.h.b16 %v234
    %v322 = vunpack.c.l.b16 %v235
    %v323 = vunpack.c.h.b16 %v235
    %v324 = vunpack.c.l.b16 %v236
    %v325 = vunpack.c.h.b16 %v236
    %v326 = vunpack.c.l.b16 %v237
    %v327 = vunpack.c.h.b16 %v237
    %v328 = vunpack.c.l.b16 %v238
    %v329 = vunpack.c.h.b16 %v238
    %v330 = vunpack.c.l.b16 %v239
    %v331 = vunpack.c.h.b16 %v239
    %v332 = vunpack.c.l.b16 %v240
    %v333 = vunpack.c.h.b16 %v240
    %v334 = vunpack.c.l.b16 %v241
    %v335 = vunpack.c.h.b16 %v241
    %v336 = vunpack.c.l.b16 %v242
    %v337 = vunpack.c.h.b16 %v242
    %v338 = vunpack.c.l.b16 %v243
    %v339 = vunpack.c.h.b16 %v243
    %v340 = vpack.c.b16 %v278, %v276
    %v341 = vpack.c.b16 %v279, %v277
    %v342 = vpack.c.b16 %v282, %v280
    %v343 = vpack.c.b16 %v283, %v281
    %v344 = vpack.c.b16 %v286, %v284
    %v345 = vpack.c.b16 %v287, %v285
    %v346 = vpack.c.b16 %v290, %v288
    %v347 = vpack.c.b16 %v291, %v289
    %v348 = vpack.c.b16 %v294, %v292
    %v349 = vpack.c.b16 %v295, %v293
    %v350 = vpack.c.b16 %v298, %v296
    %v351 = vpack.c.b16 %v299, %v297
    %v352 = vpack.c.b16 %v302, %v300
    %v353 = vpack.c.b16 %v303, %v301
    %v354 = vpack.c.b16 %v306, %v304
    %v355 = vpack.c.b16 %v307, %v305
    %v356 = vpack.c.b16 %v310, %v308
    %v357 = vpack.c.b16 %v311, %v309
    %v358 = vpack.c.b16 %v314, %v312
    %v359 = vpack.c.b16 %v315, %v313
    %v360 = vpack.c.b16 %v318, %v316
    %v361 = vpack.c.b16 %v319, %v317
    %v362 = vpack.c.b16 %v322, %v320
    %v363 = vpack.c.b16 %v323, %v321
    %v364 = vpack.c.b16 %v326, %v324
    %v365 = vpack.c.b16 %v327, %v325
    %v366 = vpack.c.b16 %v330, %v328
    %v367 = vpack.c.b16 %v331, %v329
    %v368 = vpack.c.b16 %v334, %v332
    %v369 = vpack.c.b16 %v335, %v333
    %v370 = vpack.c.b16 %v338, %v336
    %v371 = vpack.c.b16 %v339, %v337
    %404 = vmatprep.subr.bf16.mxu0 %v341
    %405 = vmatpush1.bf16.msra.mxu0 %v340
    %406 = vmatprep.subr.bf16.mxu0 %v343
    %407 = vmatpush1.bf16.msra.mxu0 %v342
    %408 = vmatprep.subr.bf16.mxu0 %v345
    %409 = vmatpush1.bf16.msra.mxu0 %v344
    %410 = vmatprep.subr.bf16.mxu0 %v347
    %411 = vmatpush1.bf16.msra.mxu0 %v346
    %412 = vmatprep.subr.bf16.mxu0 %v349
    %413 = vmatpush1.bf16.msra.mxu0 %v348
    %414 = vmatprep.subr.bf16.mxu0 %v351
    %415 = vmatpush1.bf16.msra.mxu0 %v350
    %416 = vmatprep.subr.bf16.mxu0 %v353
    %417 = vmatpush1.bf16.msra.mxu0 %v352
    %418 = vmatprep.subr.bf16.mxu0 %v355
    %419 = vmatpush1.bf16.msra.mxu0 %v354
    %420 = vmatprep.subr.bf16.mxu0 %v357
    %421 = vmatpush1.bf16.msra.mxu0 %v356
    %422 = vmatprep.subr.bf16.mxu0 %v359
    %423 = vmatpush1.bf16.msra.mxu0 %v358
    %424 = vmatprep.subr.bf16.mxu0 %v361
    %425 = vmatpush1.bf16.msra.mxu0 %v360
    %426 = vmatprep.subr.bf16.mxu0 %v363
    %427 = vmatpush1.bf16.msra.mxu0 %v362
    %428 = vmatprep.subr.bf16.mxu0 %v365
    %429 = vmatpush1.bf16.msra.mxu0 %v364
    %430 = vmatprep.subr.bf16.mxu0 %v367
    %431 = vmatpush1.bf16.msra.mxu0 %v366
    %432 = vmatprep.subr.bf16.mxu0 %v369
    %433 = vmatpush1.bf16.msra.mxu0 %v368
    %434 = vmatprep.subr.bf16.mxu0 %v371
    %435 = vmatpush1.bf16.msra.mxu0 %v370
    %436 = vmatprep.mubr.bf16.mxu0 %v211
    %437 = vmatmul.mubr.bf16.gmra.mrb[0].mxu0 %v210
    %v438 = vpop.f32.mrb[0].mxu0
    %v439 = vadd.f32 0.0, %v438
    %v440 = vpop.f32.mrb[0].mxu0
    %v441 = vadd.f32 0.0, %v440
    %v442 = vpop.f32.mrb[0].mxu0
    %v443 = vpop.f32.mrb[0].mxu0
    %444 = vdwg.mxu0
    %v445 = vadd.f32 %v208, %v439
    %v446 = vadd.f32 %v209, %v441
    %447 = vst [vmem:[#allocation2] sm:$0xff] %v445
    %448 = vst [vmem:[#allocation2 + $0x8] sm:$0xff] %v446
    // Predicated region
    $region34: #{_simple_mlp_impl.1} parent=1 // pred_check
      %p449 = pneg %p49
    $region35: #{_simple_mlp_impl.1} parent=1 // pred_check_branch
      %451 = sbr.rel (%p449) target = $region37
    $region36: #{_simple_mlp_impl.1} parent=1 // pred_region
      %v452 = vld [vmem:[#allocation2] sm:$0xff]
      %v453 = vld [vmem:[#allocation2 + $0x8] sm:$0xff]
      %v454 = vld [vmem:[%s4] sm:$0x3]
      %v456 = vlaneseq
      %v457 = vshrl.u32 %v456, 7
      %v458 = vsub.s32 0, %v457
      %v459 = vrot.slane %v454, %v458
      %v460 = vlaneseq
      %v461 = vshrl.u32 %v460, 7
      %v462 = vsub.s32 1, %v461
      %v463 = vrot.slane %v454, %v462
      %v466 = vadd.f32 %v452, %v459
      %v467 = vadd.f32 %v453, %v463
      %468 = vst [vmem:[%s5] sm:$0xff] %v466
      %469 = vst [vmem:[%s5 + $0x8] sm:$0xff] %v467
    $region37: #{_simple_mlp_impl.1} parent=1 // pred_fallthru
      _
    // Predicated region
    $region38: #{_simple_mlp_impl.1} parent=1 // pred_check
      _
    $region39: #{_simple_mlp_impl.1} parent=1 // pred_check_branch
      %471 = sbr.rel (0) target = $region41
    $region40: #{_simple_mlp_impl.1} parent=1 // pred_region
      _
    $region41: #{_simple_mlp_impl.1} parent=1 // pred_fallthru
      _
    // Predicated region
    $region42: #{_simple_mlp_impl.1} parent=1 // pred_check
      _
    $region43: #{_simple_mlp_impl.1} parent=1 // pred_check_branch
      %473 = sbr.rel (0) target = $region45
    $region44: #{_simple_mlp_impl.1} parent=1 // pred_region
      _
    $region45: #{_simple_mlp_impl.1} parent=1 // pred_fallthru
      _
    %474 = vsyncpa [#allocation4], 1
    %475 = vsyncpa [#allocation6], 1

</llo_original>
